<compile_context>
chip_gen: v5e
topology: v5e:2x2
jax: 0.10.0
libtpu: 0.0.40
codegen_flags: <defaults>
</compile_context>

<pallas_src>
import numpy as np
import jax
import jax.numpy as jnp
from jax.experimental import pallas as pl
from jax.experimental.pallas import tpu as pltpu

# ---------------- problem sizes (small, synthetic) ----------------
B, C = 2, 4          # batch, channels  (BC = 8 -> fills 8 sublanes / MXU rows, no padding)
A = 8                # number of projection angles
D = 16               # number of detector bins      (A*D = 128 -> one full lane width)
H = W = 16           # reconstruction image size
P = H * W            # number of image pixels       (256 -> full MXU output width on v6e/v7x)
DET_SPACING = float(np.sqrt(2.0) * W / D)   # detector covers the image diagonal


# ---------------- parameter construction (plain numpy glue) ----------------
def build_filter_matrix(filter_type="Hann", frequency_scaling=1.0, det_spacing=1.0):
    """Ramp * Hann filter (ODL fbp_filter_op analogue) as a circulant matmul matrix."""
    freqs = np.fft.rfftfreq(D, d=det_spacing)
    f_max = freqs[-1] if freqs[-1] > 0 else 1.0
    cutoff = frequency_scaling * f_max
    ramp = np.abs(freqs)
    if filter_type == "Hann":
        window = 0.5 * (1.0 + np.cos(np.pi * freqs / cutoff))
    else:
        window = np.ones_like(freqs)
    window = np.where(freqs <= cutoff, window, 0.0)
    fourier_filter = ramp * window
    h = np.fft.irfft(fourier_filter, n=D)                 # spatial (circular) filter taps
    idx = (np.arange(D)[None, :] - np.arange(D)[:, None]) % D
    F = h[idx]                                            # filtered_row = row @ F
    return F.astype(np.float32)


def build_backprojection_matrix(det_spacing):
    """Parallel-beam 2D adjoint (back-projection) as a dense (A, D, P) matrix."""
    thetas = np.arange(A) * (np.pi / A)
    xs = (np.arange(W) - (W - 1) / 2.0)                   # pixel centers, spacing 1
    ys = (np.arange(H) - (H - 1) / 2.0)
    Y, X = np.meshgrid(ys, xs, indexing="ij")             # (H, W): row = y, col = x
    Xf, Yf = X.reshape(-1), Y.reshape(-1)                 # (P,)
    s0 = -(D - 1) / 2.0 * det_spacing
    dtheta = np.pi / A
    bp = np.zeros((A, D, P), dtype=np.float32)
    pidx = np.arange(P)
    for a in range(A):
        t = Xf * np.cos(thetas[a]) + Yf * np.sin(thetas[a])
        u = (t - s0) / det_spacing
        d0 = np.floor(u).astype(np.int64)
        frac = u - d0
        d1 = d0 + 1
        w0 = np.where((d0 >= 0) & (d0 < D), (1.0 - frac) * dtheta, 0.0)
        w1 = np.where((d1 >= 0) & (d1 < D), frac * dtheta, 0.0)
        bp[a, np.clip(d0, 0, D - 1), pidx] += w0
        bp[a, np.clip(d1, 0, D - 1), pidx] += w1
    return bp.astype(np.float32)


def build_folded_operator(filt_np, bp_np):
    """Fold circulant filter into the back-projection:  G[(a,d), p] = sum_e filt[d,e] bp[a,e,p]."""
    G = np.einsum("de,aep->adp", filt_np, bp_np).reshape(A * D, P)
    # bf16 operand: MXU-native on v5e/v6e/v7x, halves DMA/VMEM bytes; fp32 accumulation
    # is preserved via preferred_element_type inside the kernel.
    return jnp.asarray(G, dtype=jnp.bfloat16)             # (128, 256), exactly (8,128)-tiled


# ---------------- Pallas kernel: one lane-dense matmul, single grid step ----------------
def fbp_kernel(x_ref, g_ref, o_ref):
    # x_ref: (Mp, A*D)   sinogram rows (batch*channel padded to sublane multiple, angle*det flat)
    # g_ref: (A*D, P)    folded filter+back-projection operator (full image width)
    # o_ref: (Mp, P)     reconstructed pixels
    o_ref[...] = jnp.dot(x_ref[...], g_ref[...],
                         preferred_element_type=jnp.float32).astype(o_ref.dtype)


def fbp_forward(x, G):
    b, c, a, d = x.shape
    assert (a, d) == (A, D)
    m = b * c
    x2 = x.reshape(m, A * D).astype(jnp.bfloat16)           # (BC, 128): A*D on the lane axis
    m_pad = max(8, ((m + 7) // 8) * 8)                      # fill sublanes / MXU rows
    if m_pad != m:
        x2 = jnp.pad(x2, ((0, m_pad - m), (0, 0)))

    # Single grid step with full blocks: nothing to pipeline at ~140 KB total VMEM,
    # so per-step bookkeeping (~0.35 us each) is paid exactly once and the output
    # stays a single lane-dense (m_pad, 256) store.
    out = pl.pallas_call(
        fbp_kernel,
        out_shape=jax.ShapeDtypeStruct((m_pad, P), jnp.float32),
        grid=(1,),
        in_specs=[
            pl.BlockSpec((m_pad, A * D), lambda i: (0, 0)),   # whole sinogram block
            pl.BlockSpec((A * D, P), lambda i: (0, 0)),       # whole folded operator
        ],
        out_specs=pl.BlockSpec((m_pad, P), lambda i: (0, 0)),
    )(x2, G)
    return out[:m].reshape(b, c, H, W)


# pure-JAX reference: the ORIGINAL two-step math (filter matmul, then back-projection), fp32
def fbp_reference(x, filt_mat, bp_mat):
    b, c, a, d = x.shape
    x2 = x.reshape(b * c, a, d).astype(jnp.float32)
    xf = jnp.einsum("nad,de->nae", x2, filt_mat,
                    precision=jax.lax.Precision.HIGHEST)
    out = jnp.einsum("nad,adp->np", xf, bp_mat,
                     precision=jax.lax.Precision.HIGHEST)
    return out.reshape(b, c, H, W)


if __name__ == "__main__":
    key = jax.random.PRNGKey(0)
    x = jax.random.normal(key, (B, C, A, D), dtype=jnp.float32)   # synthetic sinogram

    filt_np = build_filter_matrix("Hann", 1.0, DET_SPACING)
    bp_np = build_backprojection_matrix(DET_SPACING)
    G = build_folded_operator(filt_np, bp_np)                     # (A*D, P) folded bf16 operator

    out = jax.block_until_ready(fbp_forward(x, G))

    ref = jax.block_until_ready(
        fbp_reference(x, jnp.asarray(filt_np), jnp.asarray(bp_np)))
    assert out.shape == (B, C, H, W)
    # bf16 operands (fp32 accumulation) vs fp32 reference -> ~0.4% relative operand rounding.
    assert bool(jnp.allclose(out, ref, rtol=2e-2, atol=2e-2))

    print("KERNEL_OK")
</pallas_src>

<mosaic_0001>
module attributes {stable_mosaic.version = 11 : i64} {
  func.func @fbp_kernel(%arg0: i32, %arg1: memref<8x128xbf16, #tpu.memory_space<vmem>>, %arg2: memref<128x256xbf16, #tpu.memory_space<vmem>>, %arg3: memref<8x256xf32, #tpu.memory_space<vmem>>) attributes {dimension_semantics = [#tpu.dimension_semantics<arbitrary>], iteration_bounds = array<i64: 1>, scalar_prefetch = 0 : i64, scratch_operands = 0 : i64, tpu.core_type = #tpu.core_type<tc>, window_params = [{pipeline_mode = #tpu.pipeline_mode<synchronous>, transform_indices = @transform_0, window_bounds = array<i64: 8, 128>}, {pipeline_mode = #tpu.pipeline_mode<synchronous>, transform_indices = @transform_1, window_bounds = array<i64: 128, 256>}, {pipeline_mode = #tpu.pipeline_mode<synchronous>, transform_indices = @transform_2, window_bounds = array<i64: 8, 256>}]} {
    %c0 = arith.constant 0 : index
    %c0_0 = arith.constant 0 : index
    %0 = vector.load %arg1[%c0, %c0_0] : memref<8x128xbf16, #tpu.memory_space<vmem>>, vector<8x128xbf16>
    %c0_1 = arith.constant 0 : index
    %c0_2 = arith.constant 0 : index
    %1 = vector.load %arg2[%c0_1, %c0_2] : memref<128x256xbf16, #tpu.memory_space<vmem>>, vector<128x256xbf16>
    %cst = arith.constant dense<0.000000e+00> : vector<8x256xf32>
    %2 = tpu.matmul %0, %1, %cst {dimension_numbers = #tpu.dot_dimension_numbers<[1], [0], [0], [1], [0, 0, 1, 1], [], []>} : vector<8x128xbf16>, vector<128x256xbf16>, vector<8x256xf32> -> vector<8x256xf32>
    %c0_3 = arith.constant 0 : index
    %c0_4 = arith.constant 0 : index
    %3 = vector.load %arg3[%c0_3, %c0_4] : memref<8x256xf32, #tpu.memory_space<vmem>>, vector<8x256xf32>
    tpu.vector_store %arg3[%c0_3, %c0_4], %2 {strides = array<i32>} : memref<8x256xf32, #tpu.memory_space<vmem>>, vector<8x256xf32>,
    return
  }
  func.func @transform_0(%arg0: i32) -> (i32, i32) {
    %c0_i32 = arith.constant 0 : i32
    %c0_i32_0 = arith.constant 0 : i32
    %c0_i32_1 = arith.constant 0 : i32
    return %c0_i32, %c0_i32_0 : i32, i32
  }
  func.func @transform_1(%arg0: i32) -> (i32, i32) {
    %c0_i32 = arith.constant 0 : i32
    %c0_i32_0 = arith.constant 0 : i32
    %c0_i32_1 = arith.constant 0 : i32
    return %c0_i32, %c0_i32_0 : i32, i32
  }
  func.func @transform_2(%arg0: i32) -> (i32, i32) {
    %c0_i32 = arith.constant 0 : i32
    %c0_i32_0 = arith.constant 0 : i32
    %c0_i32_1 = arith.constant 0 : i32
    return %c0_i32, %c0_i32_0 : i32, i32
  }
}

</mosaic_0001>

<llo_original>
// kernel: tpu_custom_call.1
$region0: #{tpu_custom_call.1}
  #allocation0 [shape = 'u32[]', space=smem, size = 0x4, offset = 0x4, fixed_abs, tag = 'smem constant byte address 0x4 - core index']
  #allocation1 [shape = 'u32[72,128]{1,0:T(1,128)}', space=vmem, size = 0x9000, scoped, tag = 'internal scratch']
  %s0 = inlined_call_operand.hbm [shape: bf16[8,128], index: 0, kind: input, shape index: {}]
  %s1 = inlined_call_operand.hbm [shape: bf16[128,256], index: 1, kind: input, shape index: {}]
  %s2 = inlined_call_operand.hbm [shape: f32[8,256], index: 2, kind: output, shape index: {}]
  %s3 = sld [smem:[#allocation0]]
  $region26: #{tpu_custom_call.1} parent=0
    _
  %s5 = ssub.s32 1, %s3
  %s6 = scalar_select 0, %s5, %s3
  $region1: #{tpu_custom_call.1} parent=0
    #allocation2 [shape = 'u8[2048]{0}', space=vmem, size = 0x800, scoped, tag = 'input window, operand 0, single buffered']
    #allocation3 [shape = 's32[1]{0}', space=sflag, size = 0x4, scoped, tag = 'scoped memory for tpu_custom_call.1']
    #allocation4 [shape = 's32[1]{0}', space=sflag, size = 0x4, scoped, tag = 'scoped memory for tpu_custom_call.1']
    #allocation5 [shape = 'u8[65536]{0}', space=vmem, size = 0x10000, scoped, tag = 'input window, operand 1, single buffered']
    #allocation6 [shape = 's32[1]{0}', space=sflag, size = 0x4, scoped, tag = 'scoped memory for tpu_custom_call.1']
    #allocation7 [shape = 'u8[8192]{0}', space=vmem, size = 0x2000, scoped, tag = 'output window, operand 0, single buffered']
    %7 = vsyncpa [#allocation3], 0
    %8 = vsyncpa [#allocation6], 0
    %9 = vsyncpa [#allocation4], 0
    // Predicated region
    $region2: #{tpu_custom_call.1} parent=1 // pred_check
      _
    $region3: #{tpu_custom_call.1} parent=1 // pred_check_branch
      %11 = sbr.rel (0) target = $region5
    $region4: #{tpu_custom_call.1} parent=1 // pred_region
      %13 = vsyncadd [#allocation3], 0
      %s15 = sshll.u32 %s0, 4
      %s16 = int_to_ptr.hbm [resolvable:$true] %s15
      %s17 = sshll.u32 [#allocation2], 4
      %s18 = int_to_ptr.vmem [resolvable:$true] %s17
      %20 = dma.hbm_to_vmem [thread:$0]  %s16, 64, %s18, [#allocation3]
    $region5: #{tpu_custom_call.1} parent=1 // pred_fallthru
      _
    // Predicated region
    $region6: #{tpu_custom_call.1} parent=1 // pred_check
      _
    $region7: #{tpu_custom_call.1} parent=1 // pred_check_branch
      %22 = sbr.rel (0) target = $region9
    $region8: #{tpu_custom_call.1} parent=1 // pred_region
      %24 = vsyncadd [#allocation6], 0
      %s25 = sshll.u32 %s1, 4
      %s26 = int_to_ptr.hbm [resolvable:$true] %s25
      %s27 = sshll.u32 [#allocation5], 4
      %s28 = int_to_ptr.vmem [resolvable:$true] %s27
      %33 = dma.hbm_to_vmem [thread:$0]  %s26, 2048, %s28, [#allocation6], 128, 128, 8
    $region9: #{tpu_custom_call.1} parent=1 // pred_fallthru
      _
    // Predicated region
    $region10: #{tpu_custom_call.1} parent=1 // pred_check
      _
    $region11: #{tpu_custom_call.1} parent=1 // pred_check_branch
      %35 = sbr.rel (0) target = $region13
    $region12: #{tpu_custom_call.1} parent=1 // pred_region
      %37 = dma.done [#allocation3], 64
    $region13: #{tpu_custom_call.1} parent=1 // pred_fallthru
      _
    // Predicated region
    $region14: #{tpu_custom_call.1} parent=1 // pred_check
      _
    $region15: #{tpu_custom_call.1} parent=1 // pred_check_branch
      %39 = sbr.rel (0) target = $region17
    $region16: #{tpu_custom_call.1} parent=1 // pred_region
      %41 = dma.done [#allocation6], 2048
    $region17: #{tpu_custom_call.1} parent=1 // pred_fallthru
      _
    %v42 = vld [vmem:[#allocation2] sm:$0xf]
    %v43 = vld [vmem:[#allocation5] sm:$0xff]
    %v44 = vld [vmem:[#allocation5 + $0x8] sm:$0xff]
    %v45 = vld [vmem:[#allocation5 + $0x10] sm:$0xff]
    %v46 = vld [vmem:[#allocation5 + $0x18] sm:$0xff]
    %v47 = vld [vmem:[#allocation5 + $0x20] sm:$0xff]
    %v48 = vld [vmem:[#allocation5 + $0x28] sm:$0xff]
    %v49 = vld [vmem:[#allocation5 + $0x30] sm:$0xff]
    %v50 = vld [vmem:[#allocation5 + $0x38] sm:$0xff]
    %v51 = vld [vmem:[#allocation5 + $0x40] sm:$0xff]
    %v52 = vld [vmem:[#allocation5 + $0x48] sm:$0xff]
    %v53 = vld [vmem:[#allocation5 + $0x50] sm:$0xff]
    %v54 = vld [vmem:[#allocation5 + $0x58] sm:$0xff]
    %v55 = vld [vmem:[#allocation5 + $0x60] sm:$0xff]
    %v56 = vld [vmem:[#allocation5 + $0x68] sm:$0xff]
    %v57 = vld [vmem:[#allocation5 + $0x70] sm:$0xff]
    %v58 = vld [vmem:[#allocation5 + $0x78] sm:$0xff]
    %v75 = vunpack.c.l.b16 %v43
    %v76 = vunpack.c.h.b16 %v43
    %v77 = vunpack.c.l.b16 %v44
    %v78 = vunpack.c.h.b16 %v44
    %v79 = vunpack.c.l.b16 %v45
    %v80 = vunpack.c.h.b16 %v45
    %v81 = vunpack.c.l.b16 %v46
    %v82 = vunpack.c.h.b16 %v46
    %v83 = vunpack.c.l.b16 %v47
    %v84 = vunpack.c.h.b16 %v47
    %v85 = vunpack.c.l.b16 %v48
    %v86 = vunpack.c.h.b16 %v48
    %v87 = vunpack.c.l.b16 %v49
    %v88 = vunpack.c.h.b16 %v49
    %v89 = vunpack.c.l.b16 %v50
    %v90 = vunpack.c.h.b16 %v50
    %v91 = vunpack.c.l.b16 %v51
    %v92 = vunpack.c.h.b16 %v51
    %v93 = vunpack.c.l.b16 %v52
    %v94 = vunpack.c.h.b16 %v52
    %v95 = vunpack.c.l.b16 %v53
    %v96 = vunpack.c.h.b16 %v53
    %v97 = vunpack.c.l.b16 %v54
    %v98 = vunpack.c.h.b16 %v54
    %v99 = vunpack.c.l.b16 %v55
    %v100 = vunpack.c.h.b16 %v55
    %v101 = vunpack.c.l.b16 %v56
    %v102 = vunpack.c.h.b16 %v56
    %v103 = vunpack.c.l.b16 %v57
    %v104 = vunpack.c.h.b16 %v57
    %v105 = vunpack.c.l.b16 %v58
    %v106 = vunpack.c.h.b16 %v58
    %v107 = vpack.c.b16 %v77, %v75
    %v108 = vpack.c.b16 %v78, %v76
    %v109 = vpack.c.b16 %v81, %v79
    %v110 = vpack.c.b16 %v82, %v80
    %v111 = vpack.c.b16 %v85, %v83
    %v112 = vpack.c.b16 %v86, %v84
    %v113 = vpack.c.b16 %v89, %v87
    %v114 = vpack.c.b16 %v90, %v88
    %v115 = vpack.c.b16 %v93, %v91
    %v116 = vpack.c.b16 %v94, %v92
    %v117 = vpack.c.b16 %v97, %v95
    %v118 = vpack.c.b16 %v98, %v96
    %v119 = vpack.c.b16 %v101, %v99
    %v120 = vpack.c.b16 %v102, %v100
    %v121 = vpack.c.b16 %v105, %v103
    %v122 = vpack.c.b16 %v106, %v104
    %139 = vmatpush.bf16.msra.mxu0 %v121
    %140 = vmatpush.bf16.msra.mxu0 %v119
    %141 = vmatpush.bf16.msra.mxu0 %v117
    %142 = vmatpush.bf16.msra.mxu0 %v115
    %143 = vmatpush.bf16.msra.mxu0 %v113
    %144 = vmatpush.bf16.msra.mxu0 %v111
    %145 = vmatpush.bf16.msra.mxu0 %v109
    %146 = vmatpush.bf16.msra.mxu0 %v107
    %147 = vmatmul.bf16.gmra.mxu0 %v42
    %v148 = vpop.f32.mrf.mxu0
    %v149 = vadd.f32 0.0, %v148
    %v150 = vpop.f32.mrf.mxu0
    %151 = vdwg.mxu0
    %152 = vmatpush.bf16.msra.mxu0 %v122
    %153 = vmatpush.bf16.msra.mxu0 %v120
    %154 = vmatpush.bf16.msra.mxu0 %v118
    %155 = vmatpush.bf16.msra.mxu0 %v116
    %156 = vmatpush.bf16.msra.mxu0 %v114
    %157 = vmatpush.bf16.msra.mxu0 %v112
    %158 = vmatpush.bf16.msra.mxu0 %v110
    %159 = vmatpush.bf16.msra.mxu0 %v108
    %160 = vmatmul.bf16.gmra.mxu0 %v42
    %v161 = vpop.f32.mrf.mxu0
    %v162 = vadd.f32 0.0, %v161
    %v163 = vpop.f32.mrf.mxu0
    %164 = vdwg.mxu0
    %165 = vst [vmem:[#allocation7] sm:$0xff] %v149
    %166 = vst [vmem:[#allocation7 + $0x8] sm:$0xff] %v162
    // Predicated region
    $region18: #{tpu_custom_call.1} parent=1 // pred_check
      _
    $region19: #{tpu_custom_call.1} parent=1 // pred_check_branch
      %168 = sbr.rel (0) target = $region21
    $region20: #{tpu_custom_call.1} parent=1 // pred_region
      %170 = vsyncadd [#allocation4], 0
      %s172 = sshll.u32 [#allocation7], 4
      %s173 = int_to_ptr.vmem [resolvable:$true] %s172
      %s174 = sshll.u32 %s2, 4
      %s175 = int_to_ptr.hbm [resolvable:$true] %s174
      %177 = dma.vmem_to_hbm [thread:$0]  %s173, 256, %s175, [#allocation4]
    $region21: #{tpu_custom_call.1} parent=1 // pred_fallthru
      _
    // Predicated region
    $region22: #{tpu_custom_call.1} parent=1 // pred_check
      _
    $region23: #{tpu_custom_call.1} parent=1 // pred_check_branch
      %179 = sbr.rel (0) target = $region25
    $region24: #{tpu_custom_call.1} parent=1 // pred_region
      %181 = dma.done [#allocation4], 256
    $region25: #{tpu_custom_call.1} parent=1 // pred_fallthru
      _
    %182 = vsyncpa [#allocation3], 1
    %183 = vsyncpa [#allocation6], 1
    %184 = vsyncpa [#allocation4], 1

</llo_original>
